<compile_context>
chip_gen: v7x
topology: tpu7x:2x2x1
jax: 0.10.0
libtpu: 0.0.40
codegen_flags: <defaults>
</compile_context>

<pallas_src>
import functools

import jax
import jax.numpy as jnp
from jax.experimental import pallas as pl
from jax.experimental.pallas import tpu as pltpu

CNN_SIZE = (2, 5)                    # self.cnn_size in the torch module
FLAT = CNN_SIZE[0] * CNN_SIZE[1]     # 10 = Linear in_features
POOL = 8                             # 3 x MaxPool2d(2, stride=2) == one 8x8 window max
HC, WC = CNN_SIZE[0] * POOL, CNN_SIZE[1] * POOL   # 16, 40 (cropped H, W)
NLANE = HC * WC                      # 640 = 5 * 128 lanes per sample
BLOCK_B = 512                        # batch tile; safe on v5e/v6e/v7x VMEM budgets


def _disc_kernel(x_ref, w_ref, b_ref, o_ref):
    """x_ref: (TB, 640) f32 VMEM -- row-major (h, w) pixels, one sample per row.
    w_ref: (1, 640)  f32 VMEM -- fc1 weight scattered onto lanes i*8*WC + j*8.
    b_ref: (1,)      f32 SMEM -- fc1 bias scalar.
    o_ref: (1, TB)   f32 VMEM -- sigmoid(logits), batch on the lane axis."""
    m = x_ref[...]
    n = m.shape[-1]                                     # 640 (static)
    # 3x MaxPool2d(2,2) == max over each 8x8 window.  Tree-reduce with lane
    # rotations (XLU slot, cheap) + maxes (VPU); roll by n-s brings lane k+s
    # onto lane k, so after the tree the window max sits at the window start.
    for s in (1, 2, 4):                                 # reduce over w in-window
        m = jnp.maximum(m, pltpu.roll(m, n - s, axis=1))
    for s in (WC, 2 * WC, 4 * WC):                      # reduce over h (rows are WC apart)
        m = jnp.maximum(m, pltpu.roll(m, n - s, axis=1))
    # Pooled feature (i, j) now sits at lane i*8*WC + j*8; every other lane is
    # garbage that the sparse weight vector zeroes out.
    prod = m * w_ref[...]                               # (TB, 640) VPU multiply
    logits = jnp.sum(prod, axis=1) + b_ref[0]           # (TB,) lane reduction + bias
    o_ref[0, :] = jax.nn.sigmoid(logits)                # lane-dense store


@functools.partial(jax.jit, static_argnames=("block_b",))
def cnn_binary_discriminator(x, weight, bias, *, block_b=BLOCK_B):
    """x: (B, 1, H, W) NCHW float; weight: (1, 10); bias: (1,). Returns (B,)."""
    B, C, H, W = x.shape
    assert C == 1, "module flattens to 1*2*5 features, so C must be 1"
    assert H >= HC and W >= WC
    # Successive MaxPool2d floor semantics == crop to a multiple of 8, then a
    # free contiguous reshape to (B, 640).  No transpose, no extra HBM pass.
    xr = x[:, 0, :HC, :WC].reshape(B, NLANE).astype(jnp.float32)

    # Scatter the (1, 10) fc1 weight onto the lanes where the pooled values
    # land in the kernel: feature f = i*5 + j  ->  lane i*8*WC + j*8.
    lanes = (jnp.arange(CNN_SIZE[0])[:, None] * (POOL * WC)
             + jnp.arange(CNN_SIZE[1])[None, :] * POOL).reshape(-1)     # (10,)
    w_sparse = jnp.zeros((1, NLANE), jnp.float32).at[0, lanes].set(
        weight.reshape(-1).astype(jnp.float32))
    b_arr = bias.reshape(-1).astype(jnp.float32)                        # (1,)

    tb = min(block_b, B)              # tb == B (full) or tb == 512 (mult. of 8)
    grid_b = pl.cdiv(B, tb)           # last tile may be padded; padded rows dropped below

    out = pl.pallas_call(
        _disc_kernel,
        out_shape=jax.ShapeDtypeStruct((1, grid_b * tb), jnp.float32),
        grid=(grid_b,),
        in_specs=[
            pl.BlockSpec((tb, NLANE), lambda i: (i, 0)),          # batch-tiled data
            pl.BlockSpec((1, NLANE), lambda i: (0, 0)),           # weights (stay resident)
            pl.BlockSpec(memory_space=pltpu.MemorySpace.SMEM),    # bias scalar
        ],
        out_specs=pl.BlockSpec((1, tb), lambda i: (0, i)),        # lane-dense output
        compiler_params=pltpu.CompilerParams(
            dimension_semantics=("parallel",),   # shard batch tiles across TCs (v7x)
            vmem_limit_bytes=32 * 1024 * 1024,
        ),
    )(xr, w_sparse, b_arr)
    return out[0, :B]                                   # .view(-1, 1).squeeze(1)


def _reference(x, weight, bias):
    """Plain-JAX reference mirroring the torch forward."""
    v = x
    for _ in range(3):  # MaxPool2d(2, stride=2) x 3
        Bn, Cn, Hn, Wn = v.shape
        v = v[:, :, : (Hn // 2) * 2, : (Wn // 2) * 2]
        v = v.reshape(Bn, Cn, Hn // 2, 2, Wn // 2, 2).max(axis=(3, 5))
    flat = v.reshape(-1, FLAT)
    logits = flat @ weight.T + bias
    return jax.nn.sigmoid(logits).reshape(-1, 1)[:, 0]


if __name__ == "__main__":
    key = jax.random.PRNGKey(0)
    kx, kw, kb = jax.random.split(key, 3)

    B = 2
    x = jax.random.normal(kx, (B, 1, 16, 40), dtype=jnp.float32)

    # Deterministic nn.Linear(10, 1)-style init: U(-1/sqrt(10), 1/sqrt(10)).
    bound = 1.0 / jnp.sqrt(jnp.float32(FLAT))
    weight = jax.random.uniform(kw, (1, FLAT), jnp.float32, -bound, bound)
    bias = jax.random.uniform(kb, (1,), jnp.float32, -bound, bound)

    out = jax.block_until_ready(cnn_binary_discriminator(x, weight, bias))
    ref = jax.block_until_ready(_reference(x, weight, bias))

    assert out.shape == (B,), out.shape
    assert jnp.allclose(out, ref, atol=1e-5, rtol=1e-5), (out, ref)
    print("KERNEL_OK")
</pallas_src>

<mosaic_0001>
module attributes {stable_mosaic.version = 11 : i64} {
  func.func @_disc_kernel(%arg0: i32, %arg1: memref<2x640xf32, #tpu.memory_space<vmem>>, %arg2: memref<1x640xf32, #tpu.memory_space<vmem>>, %arg3: memref<1xf32, #tpu.memory_space<smem>>, %arg4: memref<1x2xf32, #tpu.memory_space<vmem>>) attributes {dimension_semantics = [#tpu.dimension_semantics<parallel>], iteration_bounds = array<i64: 1>, scalar_prefetch = 0 : i64, scratch_operands = 0 : i64, tpu.core_type = #tpu.core_type<tc>, window_params = [{transform_indices = @transform_0, window_bounds = array<i64: 2, 640>}, {pipeline_mode = #tpu.pipeline_mode<synchronous>, transform_indices = @transform_1, window_bounds = array<i64: 1, 640>}, {transform_indices = @transform_2, window_bounds = array<i64: 1>}, {transform_indices = @transform_3, window_bounds = array<i64: 1, 2>}]} {
    %c0 = arith.constant 0 : index
    %c0_0 = arith.constant 0 : index
    %0 = vector.load %arg1[%c0, %c0_0] : memref<2x640xf32, #tpu.memory_space<vmem>>, vector<2x640xf32>
    %c639_i32 = arith.constant 639 : i32
    %1 = tpu.dynamic_rotate %0 by %c639_i32 dim 1 : vector<2x640xf32>, i32 -> vector<2x640xf32>
    %2 = arith.maximumf %0, %1 : vector<2x640xf32>
    %c638_i32 = arith.constant 638 : i32
    %3 = tpu.dynamic_rotate %2 by %c638_i32 dim 1 : vector<2x640xf32>, i32 -> vector<2x640xf32>
    %4 = arith.maximumf %2, %3 : vector<2x640xf32>
    %c636_i32 = arith.constant 636 : i32
    %5 = tpu.dynamic_rotate %4 by %c636_i32 dim 1 : vector<2x640xf32>, i32 -> vector<2x640xf32>
    %6 = arith.maximumf %4, %5 : vector<2x640xf32>
    %c600_i32 = arith.constant 600 : i32
    %7 = tpu.dynamic_rotate %6 by %c600_i32 dim 1 : vector<2x640xf32>, i32 -> vector<2x640xf32>
    %8 = arith.maximumf %6, %7 : vector<2x640xf32>
    %c560_i32 = arith.constant 560 : i32
    %9 = tpu.dynamic_rotate %8 by %c560_i32 dim 1 : vector<2x640xf32>, i32 -> vector<2x640xf32>
    %10 = arith.maximumf %8, %9 : vector<2x640xf32>
    %c480_i32 = arith.constant 480 : i32
    %11 = tpu.dynamic_rotate %10 by %c480_i32 dim 1 : vector<2x640xf32>, i32 -> vector<2x640xf32>
    %12 = arith.maximumf %10, %11 : vector<2x640xf32>
    %c0_1 = arith.constant 0 : index
    %c0_2 = arith.constant 0 : index
    %13 = vector.load %arg2[%c0_1, %c0_2] : memref<1x640xf32, #tpu.memory_space<vmem>>, vector<1x640xf32>
    %14 = vector.broadcast %13 : vector<1x640xf32> to vector<2x640xf32>
    %15 = arith.mulf %12, %14 : vector<2x640xf32>
    %cst = arith.constant dense<0.000000e+00> : vector<2xf32>
    %16 = vector.multi_reduction <add>, %15, %cst [1] : vector<2x640xf32> to vector<2xf32>
    %c0_3 = arith.constant 0 : index
    %17 = memref.load %arg3[%c0_3] : memref<1xf32, #tpu.memory_space<smem>>
    %18 = vector.broadcast %17 : f32 to vector<2xf32>
    %19 = arith.addf %16, %18 : vector<2xf32>
    %20 = arith.negf %19 : vector<2xf32>
    %21 = math.exp %20 : vector<2xf32>
    %cst_4 = arith.constant 1.000000e+00 : f32
    %22 = vector.broadcast %cst_4 : f32 to vector<2xf32>
    %23 = arith.addf %22, %21 : vector<2xf32>
    %24 = arith.divf %22, %23 : vector<2xf32>
    %c0_5 = arith.constant 0 : index
    %c0_6 = arith.constant 0 : index
    %25 = vector.load %arg4[%c0_5, %c0_6] : memref<1x2xf32, #tpu.memory_space<vmem>>, vector<1x2xf32>
    %26 = vector.shape_cast %25 : vector<1x2xf32> to vector<2xf32>
    %27 = vector.shape_cast %24 : vector<2xf32> to vector<1x2xf32>
    tpu.vector_store %arg4[%c0_5, %c0_6], %27 {strides = array<i32>} : memref<1x2xf32, #tpu.memory_space<vmem>>, vector<1x2xf32>,
    return
  }
  func.func @transform_0(%arg0: i32) -> (i32, i32) {
    %c0_i32 = arith.constant 0 : i32
    %c0_i32_0 = arith.constant 0 : i32
    return %arg0, %c0_i32 : i32, i32
  }
  func.func @transform_1(%arg0: i32) -> (i32, i32) {
    %c0_i32 = arith.constant 0 : i32
    %c0_i32_0 = arith.constant 0 : i32
    %c0_i32_1 = arith.constant 0 : i32
    return %c0_i32, %c0_i32_0 : i32, i32
  }
  func.func @transform_2(%arg0: i32) -> i32 {
    %c0_i32 = arith.constant 0 : i32
    %c0_i32_0 = arith.constant 0 : i32
    return %c0_i32 : i32
  }
  func.func @transform_3(%arg0: i32) -> (i32, i32) {
    %c0_i32 = arith.constant 0 : i32
    %c0_i32_0 = arith.constant 0 : i32
    return %c0_i32, %arg0 : i32, i32
  }
}

</mosaic_0001>

<llo_original>
// kernel: squeeze.2
$region0: #{squeeze.2}
  %s0 = inlined_call_operand.vmem [shape: f32[2,1,16,40], index: 0, kind: input, shape index: {}]
  %s1 = inlined_call_operand.vmem [shape: f32[2,640], index: 1, kind: output, shape index: {}]
  $region1: #{squeeze.2} parent=0
    #allocation0 [shape = 'u8[20480]{0}', space=vmem, size = 0x5000, scoped, tag = 'scoped mem for output reshape']
    %s2 = smov 3
    %v3 = vld [vmem:[%s0] ss:$16 sm:%s2]
    %vm4 = vcmask 326656
    %5 = vst.msk [vmem:[#allocation0] sm:$0x3] %vm4, %v3
    %s6 = scalar_lea.vmem %s0, 3
    %s7 = smov 3
    %v8 = vld [vmem:[%s6] ss:$16 sm:%s7]
    %s9 = scalar_lea.vmem %s0, 3
    %s10 = smov 3
    %v11 = vld [vmem:[%s9] ss:$16 sm:%s10]
    %vm12 = vcmask 64512
    %v13 = vsel %vm12, %v11, %v8
    %14 = vrot.lane.b32.xlu0 %v13, 120
    %v15 = vpop.permute.xlu0 %14
    %vm16 = vcmask 261120
    %s17 = scalar_lea.vmem [#allocation0], 8
    %18 = vst.msk [vmem:[%s17] sm:$0x3] %vm16, %v15
    %vm19 = vcmask 1048512
    %20 = vst.msk [vmem:[#allocation0] sm:$0x3] %vm19, %v15
    %s21 = scalar_lea.vmem %s0, 6
    %s22 = smov 3
    %v23 = vld [vmem:[%s21] ss:$16 sm:%s22]
    %s24 = scalar_lea.vmem %s0, 6
    %s25 = smov 3
    %v26 = vld [vmem:[%s24] ss:$16 sm:%s25]
    %vm27 = vcmask 130048
    %v28 = vsel %vm27, %v26, %v23
    %29 = vrot.lane.b32.xlu0 %v28, 112
    %v30 = vpop.permute.xlu0 %29
    %vm31 = vcmask 195584
    %s32 = scalar_lea.vmem [#allocation0], 16
    %33 = vst.msk [vmem:[%s32] sm:$0x3] %vm31, %v30
    %vm34 = vcmask 1048448
    %s35 = scalar_lea.vmem [#allocation0], 8
    %36 = vst.msk [vmem:[%s35] sm:$0x3] %vm34, %v30
    %s37 = scalar_lea.vmem %s0, 9
    %s38 = smov 3
    %v39 = vld [vmem:[%s37] ss:$16 sm:%s38]
    %s40 = scalar_lea.vmem %s0, 9
    %s41 = smov 3
    %v42 = vld [vmem:[%s40] ss:$16 sm:%s41]
    %vm43 = vcmask 195584
    %v44 = vsel %vm43, %v42, %v39
    %45 = vrot.lane.b32.xlu0 %v44, 104
    %v46 = vpop.permute.xlu0 %45
    %vm47 = vcmask 130048
    %s48 = scalar_lea.vmem [#allocation0], 24
    %49 = vst.msk [vmem:[%s48] sm:$0x3] %vm47, %v46
    %vm50 = vcmask 1048384
    %s51 = scalar_lea.vmem [#allocation0], 16
    %52 = vst.msk [vmem:[%s51] sm:$0x3] %vm50, %v46
    %s53 = scalar_lea.vmem %s0, 12
    %s54 = smov 3
    %v55 = vld [vmem:[%s53] ss:$16 sm:%s54]
    %s56 = scalar_lea.vmem %s0, 12
    %s57 = smov 3
    %v58 = vld [vmem:[%s56] ss:$16 sm:%s57]
    %vm59 = vcmask 261120
    %v60 = vsel %vm59, %v58, %v55
    %61 = vrot.lane.b32.xlu0 %v60, 96
    %v62 = vpop.permute.xlu0 %61
    %vm63 = vcmask 64512
    %s64 = scalar_lea.vmem [#allocation0], 32
    %65 = vst.msk [vmem:[%s64] sm:$0x3] %vm63, %v62
    %vm66 = vcmask 1048320
    %s67 = scalar_lea.vmem [#allocation0], 24
    %68 = vst.msk [vmem:[%s67] sm:$0x3] %vm66, %v62
    %s69 = scalar_lea.vmem %s0, 15
    %s70 = smov 3
    %v71 = vld [vmem:[%s69] ss:$16 sm:%s70]
    %72 = vrot.lane.b32.xlu0 %v71, 88
    %v73 = vpop.permute.xlu0 %72
    %vm74 = vcmask 1048256
    %s75 = scalar_lea.vmem [#allocation0], 32
    %76 = vst.msk [vmem:[%s75] sm:$0x3] %vm74, %v73
    %s77 = scalar_lea.vmem %s0, 2
    %s78 = smov 3
    %v79 = vld [vmem:[%s77] ss:$16 sm:%s78]
    %80 = vrot.lane.b32.xlu0 %v79, 80
    %v81 = vpop.permute.xlu0 %80
    %vm82 = vcmask 982656
    %83 = vst.msk [vmem:[#allocation0] sm:$0x3] %vm82, %v81
    %s84 = scalar_lea.vmem %s0, 5
    %s85 = smov 3
    %v86 = vld [vmem:[%s84] ss:$16 sm:%s85]
    %87 = vrot.lane.b32.xlu0 %v86, 72
    %v88 = vpop.permute.xlu0 %87
    %vm89 = vcmask 917056
    %s90 = scalar_lea.vmem [#allocation0], 8
    %91 = vst.msk [vmem:[%s90] sm:$0x3] %vm89, %v88
    %s92 = scalar_lea.vmem %s0, 8
    %s93 = smov 3
    %v94 = vld [vmem:[%s92] ss:$16 sm:%s93]
    %95 = vrot.lane.b32.xlu0 %v94, 64
    %v96 = vpop.permute.xlu0 %95
    %vm97 = vcmask 851456
    %s98 = scalar_lea.vmem [#allocation0], 16
    %99 = vst.msk [vmem:[%s98] sm:$0x3] %vm97, %v96
    %s100 = scalar_lea.vmem %s0, 11
    %s101 = smov 3
    %v102 = vld [vmem:[%s100] ss:$16 sm:%s101]
    %103 = vrot.lane.b32.xlu0 %v102, 56
    %v104 = vpop.permute.xlu0 %103
    %vm105 = vcmask 785856
    %s106 = scalar_lea.vmem [#allocation0], 24
    %107 = vst.msk [vmem:[%s106] sm:$0x3] %vm105, %v104
    %s108 = scalar_lea.vmem %s0, 14
    %s109 = smov 3
    %v110 = vld [vmem:[%s108] ss:$16 sm:%s109]
    %111 = vrot.lane.b32.xlu0 %v110, 48
    %v112 = vpop.permute.xlu0 %111
    %vm113 = vcmask 720256
    %s114 = scalar_lea.vmem [#allocation0], 32
    %115 = vst.msk [vmem:[%s114] sm:$0x3] %vm113, %v112
    %s116 = scalar_lea.vmem %s0, 1
    %s117 = smov 3
    %v118 = vld [vmem:[%s116] ss:$16 sm:%s117]
    %119 = vrot.lane.b32.xlu0 %v118, 40
    %v120 = vpop.permute.xlu0 %119
    %vm121 = vcmask 654656
    %122 = vst.msk [vmem:[#allocation0] sm:$0x3] %vm121, %v120
    %s123 = scalar_lea.vmem %s0, 4
    %s124 = smov 3
    %v125 = vld [vmem:[%s123] ss:$16 sm:%s124]
    %126 = vrot.lane.b32.xlu0 %v125, 32
    %v127 = vpop.permute.xlu0 %126
    %vm128 = vcmask 589056
    %s129 = scalar_lea.vmem [#allocation0], 8
    %130 = vst.msk [vmem:[%s129] sm:$0x3] %vm128, %v127
    %s131 = scalar_lea.vmem %s0, 7
    %s132 = smov 3
    %v133 = vld [vmem:[%s131] ss:$16 sm:%s132]
    %134 = vrot.lane.b32.xlu0 %v133, 24
    %v135 = vpop.permute.xlu0 %134
    %vm136 = vcmask 523456
    %s137 = scalar_lea.vmem [#allocation0], 16
    %138 = vst.msk [vmem:[%s137] sm:$0x3] %vm136, %v135
    %s139 = scalar_lea.vmem %s0, 10
    %s140 = smov 3
    %v141 = vld [vmem:[%s139] ss:$16 sm:%s140]
    %142 = vrot.lane.b32.xlu0 %v141, 16
    %v143 = vpop.permute.xlu0 %142
    %vm144 = vcmask 457856
    %s145 = scalar_lea.vmem [#allocation0], 24
    %146 = vst.msk [vmem:[%s145] sm:$0x3] %vm144, %v143
    %s147 = scalar_lea.vmem %s0, 13
    %s148 = smov 3
    %v149 = vld [vmem:[%s147] ss:$16 sm:%s148]
    %150 = vrot.lane.b32.xlu0 %v149, 8
    %v151 = vpop.permute.xlu0 %150
    %vm152 = vcmask 392256
    %s153 = scalar_lea.vmem [#allocation0], 32
    %154 = vst.msk [vmem:[%s153] sm:$0x3] %vm152, %v151
    %s156 = sshllo.u32 0, 2
    %v158 = vld [vmem:[#allocation0] sm:%s156]
    %s159 = sshllo.u32 0, 2
    %160 = vst [vmem:[%s1] sm:%s159] %v158
    %s161 = scalar_lea.vmem [#allocation0], 8
    %v162 = vld [vmem:[%s161] sm:%s156]
    %s163 = sshllo.u32 0, 2
    %s164 = scalar_lea.vmem %s1, 2
    %165 = vst [vmem:[%s164] sm:%s163] %v162
    %s166 = scalar_lea.vmem [#allocation0], 16
    %v167 = vld [vmem:[%s166] sm:%s156]
    %s168 = sshllo.u32 0, 2
    %s169 = smul.addr 2, 2
    %s170 = scalar_lea.vmem %s1, %s169
    %171 = vst [vmem:[%s170] sm:%s168] %v167
    %s172 = scalar_lea.vmem [#allocation0], 24
    %v173 = vld [vmem:[%s172] sm:%s156]
    %s174 = sshllo.u32 0, 2
    %s175 = smul.addr 2, 3
    %s176 = scalar_lea.vmem %s1, %s175
    %177 = vst [vmem:[%s176] sm:%s174] %v173
    %s178 = scalar_lea.vmem [#allocation0], 32
    %v179 = vld [vmem:[%s178] sm:%s156]
    %s180 = sshllo.u32 0, 2
    %s181 = smul.addr 2, 4
    %s182 = scalar_lea.vmem %s1, %s181
    %183 = vst [vmem:[%s182] sm:%s180] %v179

// kernel: cnn_binary_discriminator.1
$region0: #{cnn_binary_discriminator.1}
  #allocation0 [shape = 'u32[]', space=smem, size = 0x4, offset = 0x4, fixed_abs, tag = 'smem constant byte address 0x4 - core index']
  #allocation1 [shape = 'u32[144,128]{1,0:T(1,128)}', space=vmem, size = 0x12000, scoped, tag = 'internal scratch']
  #allocation2 [shape = 'f32[1]{0:T(128)S(6)}', space=smem, size = 0x200, scoped, tag = 'scoped memory for cnn_binary_discriminator.1']
  %s0 = inlined_call_operand.vmem [shape: f32[2,640], index: 0, kind: input, shape index: {}]
  %s1 = inlined_call_operand.vmem [shape: f32[1,640], index: 1, kind: input, shape index: {}]
  %s2 = inlined_call_operand.<no memory space> [shape: f32[1], index: 2, kind: input, shape index: {}]
  %s3 = inlined_call_operand.hbm [shape: f32[1,2], index: 3, kind: output, shape index: {}]
  %s4 = sld [smem:[#allocation0]]
  $region22: #{cnn_binary_discriminator.1} parent=0
    _
  %s6 = ssub.s32 1, %s4
  %s7 = scalar_select 0, %s6, %s4
  %8 = sst [smem:[#allocation2]] %s2
  $region1: #{cnn_binary_discriminator.1} parent=0
    #allocation3 [shape = 'u8[512]{0}', space=vmem, size = 0x400, scoped, tag = 'output window, operand 0, single buffered']
    #allocation4 [shape = 's32[1]{0}', space=sflag, size = 0x4, scoped, tag = 'scoped memory for cnn_binary_discriminator.1']
    %9 = vsyncpa [#allocation4], 0
    // Predicated region
    $region2: #{cnn_binary_discriminator.1} parent=1 // pred_check
      _
    $region3: #{cnn_binary_discriminator.1} parent=1 // pred_check_branch
      %11 = sbr.rel (0) target = $region5
    $region4: #{cnn_binary_discriminator.1} parent=1 // pred_region
      _
    $region5: #{cnn_binary_discriminator.1} parent=1 // pred_fallthru
      _
    // Predicated region
    $region6: #{cnn_binary_discriminator.1} parent=1 // pred_check
      _
    $region7: #{cnn_binary_discriminator.1} parent=1 // pred_check_branch
      %13 = sbr.rel (0) target = $region9
    $region8: #{cnn_binary_discriminator.1} parent=1 // pred_region
      _
    $region9: #{cnn_binary_discriminator.1} parent=1 // pred_fallthru
      _
    // Predicated region
    $region10: #{cnn_binary_discriminator.1} parent=1 // pred_check
      _
    $region11: #{cnn_binary_discriminator.1} parent=1 // pred_check_branch
      %15 = sbr.rel (0) target = $region13
    $region12: #{cnn_binary_discriminator.1} parent=1 // pred_region
      _
    $region13: #{cnn_binary_discriminator.1} parent=1 // pred_fallthru
      _
    %v16 = vld [vmem:[%s0] sm:$0xff]
    %v17 = vld [vmem:[%s0 + $0x8] sm:$0x3]
    %v20 = vcombine.high %v16, %v16
    %v22 = vunpack.c.l.s4 1983009808
    %v23 = vunpack.c.0.s8 %v22
    %v24 = vlaneseq
    %v25 = vshrl.u32 %v24, 7
    %v26 = vsub.s32 %v23, %v25
    %v27 = vrot.slane %v16, %v26
    %v29 = vunpack.c.l.s4 1983009808
    %v30 = vunpack.c.0.s8 %v29
    %v31 = vlaneseq
    %v32 = vshrl.u32 %v31, 7
    %v33 = vsub.s32 %v30, %v32
    %v34 = vrot.slane %v20, %v33
    %v35 = vcombine.high %v27, %v27
    %v36 = vcombine.high %v34, %v34
    %v38 = vunpack.c.l.s4 1983009808
    %v39 = vunpack.c.0.s8 %v38
    %v40 = vlaneseq
    %v41 = vshrl.u32 %v40, 7
    %v42 = vsub.s32 %v39, %v41
    %v43 = vrot.slane %v17, %v42
    %49 = vrot.lane.b32.xlu0 %v27, 127
    %v50 = vpop.permute.xlu0 %49
    %51 = vrot.lane.b32.xlu0 %v35, 127
    %v52 = vpop.permute.xlu0 %51
    %53 = vrot.lane.b32.xlu0 %v34, 127
    %v54 = vpop.permute.xlu0 %53
    %55 = vrot.lane.b32.xlu0 %v36, 127
    %v56 = vpop.permute.xlu0 %55
    %57 = vrot.lane.b32.xlu0 %v43, 127
    %v58 = vpop.permute.xlu0 %57
    %v59 = vlaneseq
    %v60 = vand.u32 %v59, 127
    %vm61 = vcmp.lt.s32.totalorder %v60, 127
    %v62 = vsel %vm61, %v56, %v58
    %v63 = vsel %vm61, %v54, %v56
    %v64 = vsel %vm61, %v52, %v54
    %v65 = vsel %vm61, %v50, %v52
    %v66 = vsel %vm61, %v58, %v50
    %v72 = vcombine.low %v65, %v64
    %v73 = vcombine.low %v63, %v62
    %v75 = vunpack.c.l.s4 1983009808
    %v76 = vunpack.c.0.s8 %v75
    %v77 = vlaneseq
    %v78 = vshrl.u32 %v77, 7
    %v79 = vsub.s32 %v76, %v78
    %v80 = vrot.slane %v72, %v79
    %v82 = vunpack.c.l.s4 1983009808
    %v83 = vunpack.c.0.s8 %v82
    %v84 = vlaneseq
    %v85 = vshrl.u32 %v84, 7
    %v86 = vsub.s32 %v83, %v85
    %v87 = vrot.slane %v73, %v86
    %v88 = vcombine.low %v80, %v87
    %v90 = vunpack.c.l.s4 1983009808
    %v91 = vunpack.c.0.s8 %v90
    %v92 = vlaneseq
    %v93 = vshrl.u32 %v92, 7
    %v94 = vsub.s32 %v91, %v93
    %v95 = vrot.slane %v66, %v94
    %v98 = vmax.f32 %v16, %v88
    %v99 = vmax.f32 %v17, %v95
    %v102 = vcombine.high %v98, %v98
    %v104 = vunpack.c.l.s4 1983009808
    %v105 = vunpack.c.0.s8 %v104
    %v106 = vlaneseq
    %v107 = vshrl.u32 %v106, 7
    %v108 = vsub.s32 %v105, %v107
    %v109 = vrot.slane %v98, %v108
    %v111 = vunpack.c.l.s4 1983009808
    %v112 = vunpack.c.0.s8 %v111
    %v113 = vlaneseq
    %v114 = vshrl.u32 %v113, 7
    %v115 = vsub.s32 %v112, %v114
    %v116 = vrot.slane %v102, %v115
    %v117 = vcombine.high %v109, %v109
    %v118 = vcombine.high %v116, %v116
    %v120 = vunpack.c.l.s4 1983009808
    %v121 = vunpack.c.0.s8 %v120
    %v122 = vlaneseq
    %v123 = vshrl.u32 %v122, 7
    %v124 = vsub.s32 %v121, %v123
    %v125 = vrot.slane %v99, %v124
    %131 = vrot.lane.b32.xlu0 %v109, 126
    %v132 = vpop.permute.xlu0 %131
    %133 = vrot.lane.b32.xlu0 %v117, 126
    %v134 = vpop.permute.xlu0 %133
    %135 = vrot.lane.b32.xlu0 %v116, 126
    %v136 = vpop.permute.xlu0 %135
    %137 = vrot.lane.b32.xlu0 %v118, 126
    %v138 = vpop.permute.xlu0 %137
    %139 = vrot.lane.b32.xlu0 %v125, 126
    %v140 = vpop.permute.xlu0 %139
    %vm141 = vcmp.lt.s32.totalorder %v60, 126
    %v142 = vsel %vm141, %v138, %v140
    %v143 = vsel %vm141, %v136, %v138
    %v144 = vsel %vm141, %v134, %v136
    %v145 = vsel %vm141, %v132, %v134
    %v146 = vsel %vm141, %v140, %v132
    %v152 = vcombine.low %v145, %v144
    %v153 = vcombine.low %v143, %v142
    %v155 = vunpack.c.l.s4 1983009808
    %v156 = vunpack.c.0.s8 %v155
    %v157 = vlaneseq
    %v158 = vshrl.u32 %v157, 7
    %v159 = vsub.s32 %v156, %v158
    %v160 = vrot.slane %v152, %v159
    %v162 = vunpack.c.l.s4 1983009808
    %v163 = vunpack.c.0.s8 %v162
    %v164 = vlaneseq
    %v165 = vshrl.u32 %v164, 7
    %v166 = vsub.s32 %v163, %v165
    %v167 = vrot.slane %v153, %v166
    %v168 = vcombine.low %v160, %v167
    %v170 = vunpack.c.l.s4 1983009808
    %v171 = vunpack.c.0.s8 %v170
    %v172 = vlaneseq
    %v173 = vshrl.u32 %v172, 7
    %v174 = vsub.s32 %v171, %v173
    %v175 = vrot.slane %v146, %v174
    %v178 = vmax.f32 %v98, %v168
    %v179 = vmax.f32 %v99, %v175
    %v182 = vcombine.high %v178, %v178
    %v184 = vunpack.c.l.s4 1983009808
    %v185 = vunpack.c.0.s8 %v184
    %v186 = vlaneseq
    %v187 = vshrl.u32 %v186, 7
    %v188 = vsub.s32 %v185, %v187
    %v189 = vrot.slane %v178, %v188
    %v191 = vunpack.c.l.s4 1983009808
    %v192 = vunpack.c.0.s8 %v191
    %v193 = vlaneseq
    %v194 = vshrl.u32 %v193, 7
    %v195 = vsub.s32 %v192, %v194
    %v196 = vrot.slane %v182, %v195
    %v197 = vcombine.high %v189, %v189
    %v198 = vcombine.high %v196, %v196
    %v200 = vunpack.c.l.s4 1983009808
    %v201 = vunpack.c.0.s8 %v200
    %v202 = vlaneseq
    %v203 = vshrl.u32 %v202, 7
    %v204 = vsub.s32 %v201, %v203
    %v205 = vrot.slane %v179, %v204
    %211 = vrot.lane.b32.xlu0 %v189, 124
    %v212 = vpop.permute.xlu0 %211
    %213 = vrot.lane.b32.xlu0 %v197, 124
    %v214 = vpop.permute.xlu0 %213
    %215 = vrot.lane.b32.xlu0 %v196, 124
    %v216 = vpop.permute.xlu0 %215
    %217 = vrot.lane.b32.xlu0 %v198, 124
    %v218 = vpop.permute.xlu0 %217
    %219 = vrot.lane.b32.xlu0 %v205, 124
    %v220 = vpop.permute.xlu0 %219
    %vm221 = vcmp.lt.s32.totalorder %v60, 124
    %v222 = vsel %vm221, %v218, %v220
    %v223 = vsel %vm221, %v216, %v218
    %v224 = vsel %vm221, %v214, %v216
    %v225 = vsel %vm221, %v212, %v214
    %v226 = vsel %vm221, %v220, %v212
    %v232 = vcombine.low %v225, %v224
    %v233 = vcombine.low %v223, %v222
    %v235 = vunpack.c.l.s4 1983009808
    %v236 = vunpack.c.0.s8 %v235
    %v237 = vlaneseq
    %v238 = vshrl.u32 %v237, 7
    %v239 = vsub.s32 %v236, %v238
    %v240 = vrot.slane %v232, %v239
    %v242 = vunpack.c.l.s4 1983009808
    %v243 = vunpack.c.0.s8 %v242
    %v244 = vlaneseq
    %v245 = vshrl.u32 %v244, 7
    %v246 = vsub.s32 %v243, %v245
    %v247 = vrot.slane %v233, %v246
    %v248 = vcombine.low %v240, %v247
    %v250 = vunpack.c.l.s4 1983009808
    %v251 = vunpack.c.0.s8 %v250
    %v252 = vlaneseq
    %v253 = vshrl.u32 %v252, 7
    %v254 = vsub.s32 %v251, %v253
    %v255 = vrot.slane %v226, %v254
    %v258 = vmax.f32 %v178, %v248
    %v259 = vmax.f32 %v179, %v255
    %v262 = vcombine.high %v258, %v258
    %v264 = vunpack.c.l.s4 1983009808
    %v265 = vunpack.c.0.s8 %v264
    %v266 = vlaneseq
    %v267 = vshrl.u32 %v266, 7
    %v268 = vsub.s32 %v265, %v267
    %v269 = vrot.slane %v258, %v268
    %v271 = vunpack.c.l.s4 1983009808
    %v272 = vunpack.c.0.s8 %v271
    %v273 = vlaneseq
    %v274 = vshrl.u32 %v273, 7
    %v275 = vsub.s32 %v272, %v274
    %v276 = vrot.slane %v262, %v275
    %v277 = vcombine.high %v269, %v269
    %v278 = vcombine.high %v276, %v276
    %v280 = vunpack.c.l.s4 1983009808
    %v281 = vunpack.c.0.s8 %v280
    %v282 = vlaneseq
    %v283 = vshrl.u32 %v282, 7
    %v284 = vsub.s32 %v281, %v283
    %v285 = vrot.slane %v259, %v284
    %291 = vrot.lane.b32.xlu0 %v269, 88
    %v292 = vpop.permute.xlu0 %291
    %293 = vrot.lane.b32.xlu0 %v277, 88
    %v294 = vpop.permute.xlu0 %293
    %295 = vrot.lane.b32.xlu0 %v276, 88
    %v296 = vpop.permute.xlu0 %295
    %297 = vrot.lane.b32.xlu0 %v278, 88
    %v298 = vpop.permute.xlu0 %297
    %299 = vrot.lane.b32.xlu0 %v285, 88
    %v300 = vpop.permute.xlu0 %299
    %vm301 = vcmp.lt.s32.totalorder %v60, 88
    %v302 = vsel %vm301, %v298, %v300
    %v303 = vsel %vm301, %v296, %v298
    %v304 = vsel %vm301, %v294, %v296
    %v305 = vsel %vm301, %v292, %v294
    %v306 = vsel %vm301, %v300, %v292
    %v312 = vcombine.low %v305, %v304
    %v313 = vcombine.low %v303, %v302
    %v315 = vunpack.c.l.s4 1983009808
    %v316 = vunpack.c.0.s8 %v315
    %v317 = vlaneseq
    %v318 = vshrl.u32 %v317, 7
    %v319 = vsub.s32 %v316, %v318
    %v320 = vrot.slane %v312, %v319
    %v322 = vunpack.c.l.s4 1983009808
    %v323 = vunpack.c.0.s8 %v322
    %v324 = vlaneseq
    %v325 = vshrl.u32 %v324, 7
    %v326 = vsub.s32 %v323, %v325
    %v327 = vrot.slane %v313, %v326
    %v328 = vcombine.low %v320, %v327
    %v330 = vunpack.c.l.s4 1983009808
    %v331 = vunpack.c.0.s8 %v330
    %v332 = vlaneseq
    %v333 = vshrl.u32 %v332, 7
    %v334 = vsub.s32 %v331, %v333
    %v335 = vrot.slane %v306, %v334
    %v338 = vmax.f32 %v258, %v328
    %v339 = vmax.f32 %v259, %v335
    %v342 = vcombine.high %v338, %v338
    %v344 = vunpack.c.l.s4 1983009808
    %v345 = vunpack.c.0.s8 %v344
    %v346 = vlaneseq
    %v347 = vshrl.u32 %v346, 7
    %v348 = vsub.s32 %v345, %v347
    %v349 = vrot.slane %v338, %v348
    %v351 = vunpack.c.l.s4 1983009808
    %v352 = vunpack.c.0.s8 %v351
    %v353 = vlaneseq
    %v354 = vshrl.u32 %v353, 7
    %v355 = vsub.s32 %v352, %v354
    %v356 = vrot.slane %v342, %v355
    %v357 = vcombine.high %v349, %v349
    %v358 = vcombine.high %v356, %v356
    %v360 = vunpack.c.l.s4 1983009808
    %v361 = vunpack.c.0.s8 %v360
    %v362 = vlaneseq
    %v363 = vshrl.u32 %v362, 7
    %v364 = vsub.s32 %v361, %v363
    %v365 = vrot.slane %v339, %v364
    %371 = vrot.lane.b32.xlu0 %v349, 48
    %v372 = vpop.permute.xlu0 %371
    %373 = vrot.lane.b32.xlu0 %v357, 48
    %v374 = vpop.permute.xlu0 %373
    %375 = vrot.lane.b32.xlu0 %v356, 48
    %v376 = vpop.permute.xlu0 %375
    %377 = vrot.lane.b32.xlu0 %v358, 48
    %v378 = vpop.permute.xlu0 %377
    %379 = vrot.lane.b32.xlu0 %v365, 48
    %v380 = vpop.permute.xlu0 %379
    %vm381 = vcmp.lt.s32.totalorder %v60, 48
    %v382 = vsel %vm381, %v378, %v380
    %v383 = vsel %vm381, %v376, %v378
    %v384 = vsel %vm381, %v374, %v376
    %v385 = vsel %vm381, %v372, %v374
    %v386 = vsel %vm381, %v380, %v372
    %v392 = vcombine.low %v385, %v384
    %v393 = vcombine.low %v383, %v382
    %v395 = vunpack.c.l.s4 1983009808
    %v396 = vunpack.c.0.s8 %v395
    %v397 = vlaneseq
    %v398 = vshrl.u32 %v397, 7
    %v399 = vsub.s32 %v396, %v398
    %v400 = vrot.slane %v392, %v399
    %v402 = vunpack.c.l.s4 1983009808
    %v403 = vunpack.c.0.s8 %v402
    %v404 = vlaneseq
    %v405 = vshrl.u32 %v404, 7
    %v406 = vsub.s32 %v403, %v405
    %v407 = vrot.slane %v393, %v406
    %v408 = vcombine.low %v400, %v407
    %v410 = vunpack.c.l.s4 1983009808
    %v411 = vunpack.c.0.s8 %v410
    %v412 = vlaneseq
    %v413 = vshrl.u32 %v412, 7
    %v414 = vsub.s32 %v411, %v413
    %v415 = vrot.slane %v386, %v414
    %v418 = vmax.f32 %v338, %v408
    %v419 = vmax.f32 %v339, %v415
    %v422 = vcombine.high %v418, %v418
    %v424 = vunpack.c.l.s4 1983009808
    %v425 = vunpack.c.0.s8 %v424
    %v426 = vlaneseq
    %v427 = vshrl.u32 %v426, 7
    %v428 = vsub.s32 %v425, %v427
    %v429 = vrot.slane %v418, %v428
    %v431 = vunpack.c.l.s4 1983009808
    %v432 = vunpack.c.0.s8 %v431
    %v433 = vlaneseq
    %v434 = vshrl.u32 %v433, 7
    %v435 = vsub.s32 %v432, %v434
    %v436 = vrot.slane %v422, %v435
    %v437 = vcombine.high %v429, %v429
    %v438 = vcombine.high %v436, %v436
    %v440 = vunpack.c.l.s4 1983009808
    %v441 = vunpack.c.0.s8 %v440
    %v442 = vlaneseq
    %v443 = vshrl.u32 %v442, 7
    %v444 = vsub.s32 %v441, %v443
    %v445 = vrot.slane %v419, %v444
    %451 = vrot.lane.b32.xlu0 %v429, 96
    %v452 = vpop.permute.xlu0 %451
    %453 = vrot.lane.b32.xlu0 %v437, 96
    %v454 = vpop.permute.xlu0 %453
    %455 = vrot.lane.b32.xlu0 %v436, 96
    %v456 = vpop.permute.xlu0 %455
    %457 = vrot.lane.b32.xlu0 %v438, 96
    %v458 = vpop.permute.xlu0 %457
    %459 = vrot.lane.b32.xlu0 %v445, 96
    %v460 = vpop.permute.xlu0 %459
    %vm461 = vcmp.lt.s32.totalorder %v60, 96
    %v462 = vsel %vm461, %v458, %v460
    %v463 = vsel %vm461, %v456, %v458
    %v464 = vsel %vm461, %v454, %v456
    %v465 = vsel %vm461, %v452, %v454
    %v466 = vsel %vm461, %v460, %v452
    %v472 = vcombine.low %v464, %v463
    %v473 = vcombine.low %v462, %v466
    %v475 = vunpack.c.l.s4 1983009808
    %v476 = vunpack.c.0.s8 %v475
    %v477 = vlaneseq
    %v478 = vshrl.u32 %v477, 7
    %v479 = vsub.s32 %v476, %v478
    %v480 = vrot.slane %v472, %v479
    %v482 = vunpack.c.l.s4 1983009808
    %v483 = vunpack.c.0.s8 %v482
    %v484 = vlaneseq
    %v485 = vshrl.u32 %v484, 7
    %v486 = vsub.s32 %v483, %v485
    %v487 = vrot.slane %v473, %v486
    %v488 = vcombine.low %v480, %v487
    %v490 = vunpack.c.l.s4 1983009808
    %v491 = vunpack.c.0.s8 %v490
    %v492 = vlaneseq
    %v493 = vshrl.u32 %v492, 7
    %v494 = vsub.s32 %v491, %v493
    %v495 = vrot.slane %v465, %v494
    %v498 = vmax.f32 %v418, %v488
    %v499 = vmax.f32 %v419, %v495
    %v500 = vld [vmem:[%s1] sm:$0x1f]
    %v502 = vlaneseq
    %v503 = vshrl.u32 %v502, 7
    %v504 = vsub.s32 0, %v503
    %v505 = vrot.slane %v500, %v504
    %v506 = vlaneseq
    %v507 = vshrl.u32 %v506, 7
    %v508 = vsub.s32 1, %v507
    %v509 = vrot.slane %v500, %v508
    %v510 = vlaneseq
    %v511 = vshrl.u32 %v510, 7
    %v512 = vsub.s32 2, %v511
    %v513 = vrot.slane %v500, %v512
    %v514 = vlaneseq
    %v515 = vshrl.u32 %v514, 7
    %v516 = vsub.s32 3, %v515
    %v517 = vrot.slane %v500, %v516
    %v518 = vlaneseq
    %v519 = vshrl.u32 %v518, 7
    %v520 = vsub.s32 4, %v519
    %v521 = vrot.slane %v500, %v520
    %v522 = vcombine.low %v505, %v509
    %v523 = vcombine.low %v513, %v517
    %v525 = vunpack.c.l.s4 1983009808
    %v526 = vunpack.c.0.s8 %v525
    %v527 = vlaneseq
    %v528 = vshrl.u32 %v527, 7
    %v529 = vsub.s32 %v526, %v528
    %v530 = vrot.slane %v522, %v529
    %v532 = vunpack.c.l.s4 1983009808
    %v533 = vunpack.c.0.s8 %v532
    %v534 = vlaneseq
    %v535 = vshrl.u32 %v534, 7
    %v536 = vsub.s32 %v533, %v535
    %v537 = vrot.slane %v523, %v536
    %v538 = vcombine.low %v530, %v537
    %v540 = vunpack.c.l.s4 1983009808
    %v541 = vunpack.c.0.s8 %v540
    %v542 = vlaneseq
    %v543 = vshrl.u32 %v542, 7
    %v544 = vsub.s32 %v541, %v543
    %v545 = vrot.slane %v521, %v544
    %v548 = vmul.f32 %v498, %v538
    %v549 = vmul.f32 %v499, %v545
    %v552 = vcombine.high %v548, %v548
    %v554 = vunpack.c.l.s4 1983009808
    %v555 = vunpack.c.0.s8 %v554
    %v556 = vlaneseq
    %v557 = vshrl.u32 %v556, 7
    %v558 = vsub.s32 %v555, %v557
    %v559 = vrot.slane %v548, %v558
    %v561 = vunpack.c.l.s4 1983009808
    %v562 = vunpack.c.0.s8 %v561
    %v563 = vlaneseq
    %v564 = vshrl.u32 %v563, 7
    %v565 = vsub.s32 %v562, %v564
    %v566 = vrot.slane %v552, %v565
    %v567 = vcombine.high %v559, %v559
    %v568 = vcombine.high %v566, %v566
    %v570 = vunpack.c.l.s4 1983009808
    %v571 = vunpack.c.0.s8 %v570
    %v572 = vlaneseq
    %v573 = vshrl.u32 %v572, 7
    %v574 = vsub.s32 %v571, %v573
    %v575 = vrot.slane %v549, %v574
    %vm581 = vcmask 1041408
    %v582 = vsel %vm581, %v559, 0.0
    %v583 = vsel %vm581, %v567, 0.0
    %v584 = vadd.f32 %v582, %v583
    %v585 = vsel %vm581, %v566, 0.0
    %v586 = vadd.f32 %v584, %v585
    %v587 = vsel %vm581, %v568, 0.0
    %v588 = vadd.f32 %v586, %v587
    %v589 = vsel %vm581, %v575, 0.0
    %v590 = vadd.f32 %v588, %v589
    %591 = vadd.xlane.f32.xlu0 %v590
    %v592 = vpop.xlane.xlu0 %591
    %s593 = sld [smem:[#allocation2]]
    %v594 = vstv %s593
    %v595 = vadd.f32 %v592, %v594
    %v596 = vxor.u32 %v595, 2147483648
    %v597 = vmul.f32 %v596, 1.442695
    %v598 = vpow.pop %v597
    %v599 = vadd.f32 %v598, 1.0
    %v600 = vrcp.pop %v599
    %v601 = vmul.f32 1.0, %v600
    %v603 = vlaneseq
    %v604 = vshrl.u32 %v603, 7
    %v605 = vsub.s32 %v60, %v604
    %v606 = vrot.slane %v601, %v605
    %vm608 = vcmask 8192
    %609 = vst.msk [vmem:[#allocation3] sm:$0x1] %vm608, %v606
    // Predicated region
    $region14: #{cnn_binary_discriminator.1} parent=1 // pred_check
      _
    $region15: #{cnn_binary_discriminator.1} parent=1 // pred_check_branch
      %611 = sbr.rel (0) target = $region17
    $region16: #{cnn_binary_discriminator.1} parent=1 // pred_region
      %s613 = ssub.s32 16, 16
      %614 = vsyncadd [#allocation4], %s613
      %s616 = sshll.u32 [#allocation3], 4
      %s617 = int_to_ptr.vmem [resolvable:$true] %s616
      %619 = dma.vmem_to_hbm [thread:$0]  %s617, 16, %s3, [#allocation4]
    $region17: #{cnn_binary_discriminator.1} parent=1 // pred_fallthru
      _
    // Predicated region
    $region18: #{cnn_binary_discriminator.1} parent=1 // pred_check
      _
    $region19: #{cnn_binary_discriminator.1} parent=1 // pred_check_branch
      %621 = sbr.rel (0) target = $region21
    $region20: #{cnn_binary_discriminator.1} parent=1 // pred_region
      %622 = dma.done [#allocation4], 16
    $region21: #{cnn_binary_discriminator.1} parent=1 // pred_fallthru
      _
    %623 = vsyncpa [#allocation4], 1

</llo_original>
